<compile_context>
chip_gen: v5e
topology: v5e:2x2
jax: 0.10.0
libtpu: 0.0.40
codegen_flags: <defaults>
</compile_context>

<pallas_src>
import math

import jax
import jax.numpy as jnp
from jax.experimental import pallas as pl
from jax.experimental.pallas import tpu as pltpu


def _round_up(a, b):
    return (a + b - 1) // b * b


def _vmem_budget_bytes():
    """Generation-aware double-buffer budget: ~1/4 of physical VMEM, capped at 28 MiB."""
    try:
        cap = pltpu.get_tpu_info().vmem_capacity_bytes
    except Exception:
        cap = 64 * 1024 * 1024   # conservative fallback (v7x per-TC size)
    return min(cap // 4, 28 * 1024 * 1024)


def _pick_tile_hw(hw_pad, c, o, x_itemsize, out_itemsize, budget_bytes, min_blocks=1):
    """Largest 128-multiple divisor of hw_pad whose double-buffered x+out tiles fit the budget.

    min_blocks > 1 forces >= that many spatial tiles (v7x megacore occupancy when N < 2).
    """
    lane_bytes = 2 * (c * x_itemsize + o * out_itemsize)   # double-buffered input + output per lane
    budget_tile = max(128, budget_bytes // lane_bytes)
    n128 = hw_pad // 128
    cands = sorted({128 * d for d in range(1, n128 + 1) if n128 % d == 0}, reverse=True)
    for t in cands:
        if t <= budget_tile and hw_pad // t >= min_blocks:
            return t
    for t in cands:                 # relax the min_blocks requirement if unsatisfiable
        if t <= budget_tile:
            return t
    return cands[-1]                # 128 (budget always >= one 128-lane tile in practice)


def _torgb_kernel(wmod_ref, bias_ref, x_ref, o_ref):
    # wmod_ref : (O, C)  modulated 1x1 conv weight for this batch element (stream dtype)
    # bias_ref : (O, 1)  conv bias, f32 (pre-shaped in the wrapper: no in-kernel transpose)
    # x_ref    : (C, T)  spatial tile of the input feature map (lane-dense, stream dtype)
    # o_ref    : (O, T)  spatial tile of the output
    y = jnp.dot(wmod_ref[...], x_ref[...], preferred_element_type=jnp.float32)
    y = y + bias_ref[...]
    o_ref[...] = jnp.clip(y, -256.0, 256.0).astype(o_ref.dtype)


def to_rgb_layer2(x, w, affine_w, affine_b, conv_w, conv_b, *,
                  out_dtype=jnp.float32, tile_hw=None, min_pallas_hw=512):
    """ToRGBLayer2 forward.

    x: (N, C, H, W) feature map (f32 or bf16 -- streamed as-is, no wrapper cast).
    w: (N, w_dim) latent, f32.
    """
    N, C, H, W = x.shape
    w_dim = w.shape[1]
    O = conv_w.shape[0]
    HW = H * W

    affine_gain = 1.0 / math.sqrt(w_dim)       # FullyConnectedLayer weight gain
    weight_gain = 1.0 / math.sqrt(C * 1 * 1)   # ToRGBLayer2 weight_gain (k=1)

    # --- Hoisted affine + modulation (tiny: N*w_dim*C flops), done in f32 ---
    styles = (w.astype(jnp.float32) @ affine_w.T) * affine_gain + affine_b[None, :]   # (N, C)
    styles = styles * weight_gain
    w_mod = conv_w.reshape(O, C)[None, :, :] * styles[:, None, :]                     # (N, O, C)

    # --- Tiny-spatial dispatch: XLA fusion beats Pallas overhead for early 4x4/8x8 layers ---
    if HW < min_pallas_hw and tile_hw is None:
        y = jnp.einsum('noc,nchw->nohw', w_mod, x.astype(jnp.float32))
        y = y + conv_b.astype(jnp.float32)[None, :, None, None]
        return jnp.clip(y, -256.0, 256.0).astype(out_dtype)

    # --- Spatial layout: pad HW only to the next 128-multiple (copy-free for pow2 reslns) ---
    HW_pad = _round_up(HW, 128)
    x_flat = x.reshape(N, C, HW)
    if HW_pad != HW:
        x_flat = jnp.pad(x_flat, ((0, 0), (0, 0), (0, HW_pad - HW)))

    stream_dtype = x_flat.dtype
    x_itemsize = jnp.dtype(stream_dtype).itemsize
    out_itemsize = jnp.dtype(out_dtype).itemsize

    if tile_hw is not None:
        tile = min(int(tile_hw), HW_pad)
        assert tile % 128 == 0 and HW_pad % tile == 0, \
            "tile_hw must be a 128-multiple divisor of round_up(H*W, 128)"
    else:
        min_blocks = 2 if N < 2 else 1   # v7x: keep both TensorCores busy for single-image runs
        tile = _pick_tile_hw(HW_pad, C, O, x_itemsize, out_itemsize,
                             _vmem_budget_bytes(), min_blocks=min_blocks)

    w_mod = w_mod.astype(stream_dtype)                       # tiny (N,O,C) array
    conv_b2 = conv_b.reshape(O, 1).astype(jnp.float32)       # bias added in f32 post-accumulate

    grid = (N, HW_pad // tile)

    vmem_needed = (2 * tile * (C * x_itemsize + O * out_itemsize)
                   + 2 * O * C * x_itemsize + 2 * O * 4 + (1 << 16))
    vmem_limit = min(int(1.5 * vmem_needed) + (1 << 20), 64 * 1024 * 1024)

    out_flat = pl.pallas_call(
        _torgb_kernel,
        out_shape=jax.ShapeDtypeStruct((N, O, HW_pad), out_dtype),
        grid_spec=pltpu.PrefetchScalarGridSpec(
            num_scalar_prefetch=0,
            grid=grid,
            in_specs=[
                pl.BlockSpec((pl.Squeezed(), O, C), lambda n, t: (n, 0, 0)),     # w_mod
                pl.BlockSpec((O, 1), lambda n, t: (0, 0)),                        # bias
                pl.BlockSpec((pl.Squeezed(), C, tile), lambda n, t: (n, 0, t)),   # x tile
            ],
            out_specs=pl.BlockSpec((pl.Squeezed(), O, tile), lambda n, t: (n, 0, t)),
        ),
        compiler_params=pltpu.CompilerParams(
            dimension_semantics=("parallel", "parallel"),
            vmem_limit_bytes=vmem_limit,
        ),
    )(w_mod, conv_b2, x_flat)

    return out_flat[:, :, :HW].reshape(N, O, H, W)


def to_rgb_layer2_ref(x, w, affine_w, affine_b, conv_w, conv_b):
    """Pure-JAX reference mirroring the PyTorch forward (f32)."""
    N, C, H, W = x.shape
    w_dim = w.shape[1]
    O = conv_w.shape[0]
    styles = (w.astype(jnp.float32) @ affine_w.T) * (1.0 / math.sqrt(w_dim)) + affine_b[None, :]
    styles = styles * (1.0 / math.sqrt(C))
    w_mod = conv_w.reshape(O, C)[None, :, :] * styles[:, None, :]     # (N, O, C)
    y = jnp.einsum('noc,nchw->nohw', w_mod, x.astype(jnp.float32))
    y = y + conv_b[None, :, None, None]
    return jnp.clip(y, -256.0, 256.0)


if __name__ == "__main__":
    key = jax.random.PRNGKey(0)
    k1, k2, k3, k4, k5, k6 = jax.random.split(key, 6)

    # Small shapes consistent with the torgb stage of SynthesisBlock.
    N, C, O, w_dim = 2, 32, 3, 32

    affine_w = jax.random.normal(k3, (C, w_dim), dtype=jnp.float32)   # FC weight (torch.randn[out,in])
    affine_b = jnp.ones((C,), dtype=jnp.float32)                      # bias_init=1
    conv_w = jax.random.normal(k4, (O, C, 1, 1), dtype=jnp.float32)   # torch.randn
    conv_b = jnp.zeros((O,), dtype=jnp.float32)                       # torch.zeros
    w = jax.random.normal(k2, (N, w_dim), dtype=jnp.float32)

    # Case 1: H=W=32 (HW=1024, already a 128-multiple -> copy-free), default auto tile.
    x1 = jax.random.normal(k1, (N, C, 32, 32), dtype=jnp.float32)
    out1 = jax.block_until_ready(to_rgb_layer2(x1, w, affine_w, affine_b, conv_w, conv_b))
    ref1 = to_rgb_layer2_ref(x1, w, affine_w, affine_b, conv_w, conv_b)
    assert out1.shape == (N, O, 32, 32)
    assert jnp.allclose(out1, ref1, atol=1e-3, rtol=1e-3), "case1 mismatch vs reference"

    # Case 2: H=W=16 (HW=256), forced small tile -> exercises the multi-tile spatial grid axis.
    x2 = jax.random.normal(k5, (N, C, 16, 16), dtype=jnp.float32)
    out2 = jax.block_until_ready(
        to_rgb_layer2(x2, w, affine_w, affine_b, conv_w, conv_b, tile_hw=128, min_pallas_hw=0))
    ref2 = to_rgb_layer2_ref(x2, w, affine_w, affine_b, conv_w, conv_b)
    assert out2.shape == (N, O, 16, 16)
    assert jnp.allclose(out2, ref2, atol=1e-3, rtol=1e-3), "case2 tiled mismatch vs reference"

    # Case 3: H=W=24 (HW=576 -> padded to 640) -> exercises the <128-lane padding path.
    x3 = jax.random.normal(k6, (N, C, 24, 24), dtype=jnp.float32)
    out3 = jax.block_until_ready(
        to_rgb_layer2(x3, w, affine_w, affine_b, conv_w, conv_b, min_pallas_hw=0))
    ref3 = to_rgb_layer2_ref(x3, w, affine_w, affine_b, conv_w, conv_b)
    assert out3.shape == (N, O, 24, 24)
    assert jnp.allclose(out3, ref3, atol=1e-3, rtol=1e-3), "case3 padded mismatch vs reference"

    # Case 4: tiny spatial (HW=64 < 512) -> XLA einsum dispatch path.
    x4 = jax.random.normal(k1, (N, C, 8, 8), dtype=jnp.float32)
    out4 = jax.block_until_ready(to_rgb_layer2(x4, w, affine_w, affine_b, conv_w, conv_b))
    ref4 = to_rgb_layer2_ref(x4, w, affine_w, affine_b, conv_w, conv_b)
    assert jnp.allclose(out4, ref4, atol=1e-3, rtol=1e-3), "case4 small-HW dispatch mismatch"

    # Case 5: bf16 feature map arriving from the producer (no wrapper cast; f32 accumulation)
    #         and bf16 output, checked with a relative tolerance.
    x5 = x1.astype(jnp.bfloat16)
    out5 = jax.block_until_ready(
        to_rgb_layer2(x5, w, affine_w, affine_b, conv_w, conv_b, out_dtype=jnp.bfloat16))
    ref5 = to_rgb_layer2_ref(x5, w, affine_w, affine_b, conv_w, conv_b)
    rel_err = jnp.max(jnp.abs(out5.astype(jnp.float32) - ref5) / (jnp.abs(ref5) + 1.0))
    assert out5.dtype == jnp.bfloat16 and float(rel_err) < 2e-2, "case5 bf16 path diverged"

    print("KERNEL_OK")
</pallas_src>

<mosaic_0001>
module attributes {stable_mosaic.version = 11 : i64} {
  func.func @_torgb_kernel(%arg0: i32, %arg1: i32, %arg2: memref<1x3x32xf32, #tpu.memory_space<vmem>>, %arg3: memref<3x1xf32, #tpu.memory_space<vmem>>, %arg4: memref<1x32x1024xf32, #tpu.memory_space<vmem>>, %arg5: memref<1x3x1024xf32, #tpu.memory_space<vmem>>) attributes {dimension_semantics = [#tpu.dimension_semantics<parallel>, #tpu.dimension_semantics<parallel>], iteration_bounds = array<i64: 2, 1>, scalar_prefetch = 0 : i64, scratch_operands = 0 : i64, tpu.core_type = #tpu.core_type<tc>, window_params = [{transform_indices = @transform_0, window_bounds = array<i64: 1, 3, 32>}, {pipeline_mode = #tpu.pipeline_mode<synchronous>, transform_indices = @transform_1, window_bounds = array<i64: 3, 1>}, {transform_indices = @transform_2, window_bounds = array<i64: 1, 32, 1024>}, {transform_indices = @transform_3, window_bounds = array<i64: 1, 3, 1024>}]} {
    %c0 = arith.constant 0 : index
    %c0_0 = arith.constant 0 : index
    %c0_1 = arith.constant 0 : index
    %0 = vector.load %arg2[%c0, %c0_0, %c0_1] : memref<1x3x32xf32, #tpu.memory_space<vmem>>, vector<1x3x32xf32>
    %1 = vector.shape_cast %0 : vector<1x3x32xf32> to vector<3x32xf32>
    %c0_2 = arith.constant 0 : index
    %c0_3 = arith.constant 0 : index
    %c0_4 = arith.constant 0 : index
    %2 = vector.load %arg4[%c0_2, %c0_3, %c0_4] : memref<1x32x1024xf32, #tpu.memory_space<vmem>>, vector<1x32x1024xf32>
    %3 = vector.shape_cast %2 : vector<1x32x1024xf32> to vector<32x1024xf32>
    %cst = arith.constant dense<0.000000e+00> : vector<3x1024xf32>
    %4 = tpu.matmul %1, %3, %cst {dimension_numbers = #tpu.dot_dimension_numbers<[1], [0], [0], [1], [0, 0, 1, 1], [], []>} : vector<3x32xf32>, vector<32x1024xf32>, vector<3x1024xf32> -> vector<3x1024xf32>
    %c0_5 = arith.constant 0 : index
    %c0_6 = arith.constant 0 : index
    %5 = vector.load %arg3[%c0_5, %c0_6] : memref<3x1xf32, #tpu.memory_space<vmem>>, vector<3x1xf32>
    %6 = vector.broadcast %5 : vector<3x1xf32> to vector<3x1024xf32>
    %7 = arith.addf %4, %6 : vector<3x1024xf32>
    %cst_7 = arith.constant -2.560000e+02 : f32
    %cst_8 = arith.constant 2.560000e+02 : f32
    %8 = vector.broadcast %cst_7 : f32 to vector<3x1024xf32>
    %9 = arith.maximumf %8, %7 : vector<3x1024xf32>
    %10 = vector.broadcast %cst_8 : f32 to vector<3x1024xf32>
    %11 = arith.minimumf %10, %9 : vector<3x1024xf32>
    %c0_9 = arith.constant 0 : index
    %c0_10 = arith.constant 0 : index
    %c0_11 = arith.constant 0 : index
    %12 = vector.load %arg5[%c0_9, %c0_10, %c0_11] : memref<1x3x1024xf32, #tpu.memory_space<vmem>>, vector<1x3x1024xf32>
    %13 = vector.shape_cast %12 : vector<1x3x1024xf32> to vector<3x1024xf32>
    %14 = vector.shape_cast %11 : vector<3x1024xf32> to vector<1x3x1024xf32>
    tpu.vector_store %arg5[%c0_9, %c0_10, %c0_11], %14 {strides = array<i32>} : memref<1x3x1024xf32, #tpu.memory_space<vmem>>, vector<1x3x1024xf32>,
    return
  }
  func.func @transform_0(%arg0: i32, %arg1: i32) -> (i32, i32, i32) {
    %c0_i32 = arith.constant 0 : i32
    %c0_i32_0 = arith.constant 0 : i32
    %c0_i32_1 = arith.constant 0 : i32
    return %arg0, %c0_i32, %c0_i32_0 : i32, i32, i32
  }
  func.func @transform_1(%arg0: i32, %arg1: i32) -> (i32, i32) {
    %c0_i32 = arith.constant 0 : i32
    %c0_i32_0 = arith.constant 0 : i32
    %c0_i32_1 = arith.constant 0 : i32
    return %c0_i32, %c0_i32_0 : i32, i32
  }
  func.func @transform_2(%arg0: i32, %arg1: i32) -> (i32, i32, i32) {
    %c0_i32 = arith.constant 0 : i32
    %c0_i32_0 = arith.constant 0 : i32
    return %arg0, %c0_i32, %arg1 : i32, i32, i32
  }
  func.func @transform_3(%arg0: i32, %arg1: i32) -> (i32, i32, i32) {
    %c0_i32 = arith.constant 0 : i32
    %c0_i32_0 = arith.constant 0 : i32
    return %arg0, %c0_i32, %arg1 : i32, i32, i32
  }
}

</mosaic_0001>

<llo_original>
// kernel: tpu_custom_call.1
$region0: #{tpu_custom_call.1}
  #allocation0 [shape = 'u32[]', space=smem, size = 0x4, offset = 0x4, fixed_abs, tag = 'smem constant byte address 0x4 - core index']
  #allocation1 [shape = 'u32[72,128]{1,0:T(1,128)}', space=vmem, size = 0x9000, scoped, tag = 'internal scratch']
  %s0 = inlined_call_operand.vmem [shape: f32[2,3,32], index: 0, kind: input, shape index: {}]
  %s1 = inlined_call_operand.vmem [shape: f32[3,1], index: 1, kind: input, shape index: {}]
  %s2 = inlined_call_operand.hbm [shape: f32[2,32,1024], index: 2, kind: input, shape index: {}]
  %s3 = inlined_call_operand.vmem [shape: f32[2,3,1024], index: 3, kind: output, shape index: {}]
  %s4 = sld [smem:[#allocation0]]
  $region49: #{tpu_custom_call.1} parent=0
    _
  %s6 = ssub.s32 1, %s4
  %s7 = scalar_select 0, %s6, %s4
  $region1: #{tpu_custom_call.1} parent=0
    #allocation2 [shape = 'u8[262144]{0}', space=vmem, size = 0x40000, scoped, tag = 'input window, operand 2']
    #allocation3 [shape = 's32[2]{0}', space=sflag, size = 0x8, scoped, tag = 'scoped memory for tpu_custom_call.1']
    %8 = vsyncpa [#allocation3], 0
    %s9 = scalar_lea.sflag [#allocation3], 1
    %10 = vsyncpa %s9, 0
    loop: start=0, step=1, limit=4
    $region2: #{tpu_custom_call.1} parent=1 // loop_pre_header
      _
    $region3: #{tpu_custom_call.1} parent=1 // loop_header
      %s12 = sphi 0, %s16
      %p13 = scmp.ge.s32.totalorder %s12, 4
      %s19 = sphi 0, %s31
      %s20 = sphi 0, %s27
      %s21 = sphi 0, %s19
      %s22 = sphi 0, %s20
      %s23 = sphi 0, %s21
      %s24 = sphi 0, %s22
      %s34 = sphi 0, %s36
      %s37 = sphi 0, %s34
      %s38 = sphi 0, %s37
      %s54 = sphi 0, %s38
      %s58 = sphi 0, %s58
      %s60 = sphi 0, %s58
      %s61 = sphi 0, %s60
      %s75 = sphi 0, %s61
      %s83 = sphi 0, %s85
      %s86 = sphi 0, %s83
      %s87 = sphi 0, %s86
      %s103 = sphi 0, %s87
      %s111 = sphi 0, %s113
      %s114 = sphi 0, %s111
      %s115 = sphi 0, %s114
      %s131 = sphi 0, %s115
    $region4: #{tpu_custom_call.1} parent=1 // loop_header_branch
      %15 = sbr.rel (%p13) target = $region8
    $region5: #{tpu_custom_call.1} parent=1 // loop_body
      %s17 = ssub.s32 %s12, 1
      %s18 = ssub.s32 %s12, 2
      %s25 = sadd.s32 1, %s20
      %p26 = scmp.ge.s32.totalorder %s25, 1
      %s27 = scalar_select %p26, 0, %s25
      %s28 = sadd.s32 1, %s19
      %s29 = scalar_select %p26, %s28, %s19
      %p30 = scmp.ge.s32.totalorder %s29, 2
      %s31 = scalar_select %p30, 0, %s29
      %s32 = ssub.s32 %s19, %s31
      %p33 = scmp.eq.s32.totalorder %s32, 0
      %s35 = sadd.s32 %s34, 1
      %s36 = scalar_select %p33, %s34, %s35
      %p39 = pneg %p33
      %p40 = scmp.eq.s32.totalorder %s12, 1
      %p41 = por %p39, %p40
      %p42 = scmp.ne.s32.totalorder %s34, %s37
      %p43 = scmp.eq.s32.totalorder %s12, 0
      %p44 = por %p42, %p43
      %p45 = scmp.ne.s32.totalorder %s34, %s37
      %p46 = scmp.eq.s32.totalorder %s17, 1
      %p47 = por %p45, %p46
      %p48 = scmp.ne.s32.totalorder %s37, %s38
      %p49 = scmp.eq.s32.totalorder %s17, 0
      %p50 = por %p48, %p49
      %p51 = scmp.ne.s32.totalorder %s37, %s38
      %p52 = scmp.eq.s32.totalorder %s18, 1
      %p53 = por %p51, %p52
      %p55 = scmp.ne.s32.totalorder %s38, %s54
      %p56 = scmp.eq.s32.totalorder %s18, 0
      %p57 = por %p55, %p56
      %s59 = sadd.s32 %s58, 1
      %p62 = scmp.eq.s32.totalorder %s12, 1
      %p63 = scmp.ne.s32.totalorder %s58, %s60
      %p64 = scmp.eq.s32.totalorder %s12, 0
      %p65 = por %p63, %p64
      %p66 = scmp.ne.s32.totalorder %s58, %s60
      %p67 = scmp.eq.s32.totalorder %s17, 1
      %p68 = por %p66, %p67
      %p69 = scmp.ne.s32.totalorder %s60, %s61
      %p70 = scmp.eq.s32.totalorder %s17, 0
      %p71 = por %p69, %p70
      %p72 = scmp.ne.s32.totalorder %s60, %s61
      %p73 = scmp.eq.s32.totalorder %s18, 1
      %p74 = por %p72, %p73
      %p76 = scmp.ne.s32.totalorder %s61, %s75
      %p77 = scmp.eq.s32.totalorder %s18, 0
      %p78 = por %p76, %p77
      %s79 = ssub.s32 %s19, %s31
      %s80 = ssub.s32 %s20, %s27
      %s81 = sor.u32 %s79, %s80
      %p82 = scmp.eq.s32.totalorder %s81, 0
      %s84 = sadd.s32 %s83, 1
      %s85 = scalar_select %p82, %s83, %s84
      %p88 = pneg %p82
      %p89 = scmp.eq.s32.totalorder %s12, 1
      %p90 = por %p88, %p89
      %p91 = scmp.ne.s32.totalorder %s83, %s86
      %p92 = scmp.eq.s32.totalorder %s12, 0
      %p93 = por %p91, %p92
      %p94 = scmp.ne.s32.totalorder %s83, %s86
      %p95 = scmp.eq.s32.totalorder %s17, 1
      %p96 = por %p94, %p95
      %p97 = scmp.ne.s32.totalorder %s86, %s87
      %p98 = scmp.eq.s32.totalorder %s17, 0
      %p99 = por %p97, %p98
      %p100 = scmp.ne.s32.totalorder %s86, %s87
      %p101 = scmp.eq.s32.totalorder %s18, 1
      %p102 = por %p100, %p101
      %p104 = scmp.ne.s32.totalorder %s87, %s103
      %p105 = scmp.eq.s32.totalorder %s18, 0
      %p106 = por %p104, %p105
      %s107 = ssub.s32 %s19, %s31
      %s108 = ssub.s32 %s20, %s27
      %s109 = sor.u32 %s107, %s108
      %p110 = scmp.eq.s32.totalorder %s109, 0
      %s112 = sadd.s32 %s111, 1
      %s113 = scalar_select %p110, %s111, %s112
      %p116 = pneg %p110
      %p117 = scmp.eq.s32.totalorder %s12, 1
      %p118 = por %p116, %p117
      %p119 = scmp.ne.s32.totalorder %s111, %s114
      %p120 = scmp.eq.s32.totalorder %s12, 0
      %p121 = por %p119, %p120
      %p122 = scmp.ne.s32.totalorder %s111, %s114
      %p123 = scmp.eq.s32.totalorder %s17, 1
      %p124 = por %p122, %p123
      %p125 = scmp.ne.s32.totalorder %s114, %s115
      %p126 = scmp.eq.s32.totalorder %s17, 0
      %p127 = por %p125, %p126
      %p128 = scmp.ne.s32.totalorder %s114, %s115
      %p129 = scmp.eq.s32.totalorder %s18, 1
      %p130 = por %p128, %p129
      %p132 = scmp.ne.s32.totalorder %s115, %s131
      %p133 = scmp.eq.s32.totalorder %s18, 0
      %p134 = por %p132, %p133
      %p135 = scmp.le.s32.totalorder 1, %s12
      %p136 = scmp.lt.s32.totalorder %s12, 3
      %p137 = pnand %p135, %p136
      %p138 = pneg %p137
      // Predicated region
      $region9: #{tpu_custom_call.1} parent=5 // pred_check
        _
      $region10: #{tpu_custom_call.1} parent=5 // pred_check_branch
        %140 = sbr.rel (%p137) target = $region12
      $region11: #{tpu_custom_call.1} parent=5 // pred_region
        %s141 = ssub.s32 %s12, 1
        // Predicated region
        $region13: #{tpu_custom_call.1} parent=11 // pred_check
          %p142 = pneg %p71
        $region14: #{tpu_custom_call.1} parent=11 // pred_check_branch
          %144 = sbr.rel (%p142) target = $region16
        $region15: #{tpu_custom_call.1} parent=11 // pred_region
          _
        $region16: #{tpu_custom_call.1} parent=11 // pred_fallthru
          _
      $region12: #{tpu_custom_call.1} parent=5 // pred_fallthru
        _
      %p145 = scmp.lt.s32.totalorder %s12, 2
      // Predicated region
      $region17: #{tpu_custom_call.1} parent=5 // pred_check
        %p146 = pneg %p145
      $region18: #{tpu_custom_call.1} parent=5 // pred_check_branch
        %148 = sbr.rel (%p146) target = $region20
      $region19: #{tpu_custom_call.1} parent=5 // pred_region
        // Predicated region
        $region21: #{tpu_custom_call.1} parent=19 // pred_check
          %p149 = pneg %p44
        $region22: #{tpu_custom_call.1} parent=19 // pred_check_branch
          %151 = sbr.rel (%p149) target = $region24
        $region23: #{tpu_custom_call.1} parent=19 // pred_region
          %p152 = scmp.lt.s32.totalorder %s19, 1
          %s153 = scalar_select %p152, %s19, 1
          %s154 = smul.addr %s153, 4
          %s155 = scalar_lea.vmem %s0, %s154
        $region24: #{tpu_custom_call.1} parent=19 // pred_fallthru
          _
        // Predicated region
        $region25: #{tpu_custom_call.1} parent=19 // pred_check
          %p156 = pneg %p93
        $region26: #{tpu_custom_call.1} parent=19 // pred_check_branch
          %158 = sbr.rel (%p156) target = $region28
        $region27: #{tpu_custom_call.1} parent=19 // pred_region
          %s159 = sand.u32 %s83, 1
          %s160 = scalar_lea.sflag [#allocation3], %s159
          %s161 = sand.u32 %s83, 1
          %s162 = smul.addr %s161, 256
          %s163 = scalar_lea.vmem [#allocation2], %s162
          %s164 = smul.u32 8, %s20
          %166 = vsyncadd %s160, 0
          %s167 = smul.addr %s19, 32
          %s168 = sadd.s32 %s164, %s167
          %s169 = smul.addr %s168, 8
          %s170 = scalar_lea.hbm %s2, %s169
          %s171 = sshll.u32 %s170, 4
          %s172 = int_to_ptr.hbm [resolvable:$true] %s171
          %s173 = sshll.u32 %s163, 4
          %s174 = int_to_ptr.vmem [resolvable:$true] %s173
          %179 = dma.hbm_to_vmem [thread:$0]  %s172, 4096, %s174, %s160, 1024, 1024, 64
        $region28: #{tpu_custom_call.1} parent=19 // pred_fallthru
          _
      $region20: #{tpu_custom_call.1} parent=5 // pred_fallthru
        _
      %p180 = scmp.le.s32.totalorder 1, %s12
      %p181 = scmp.lt.s32.totalorder %s12, 3
      %p182 = pnand %p180, %p181
      %p183 = pneg %p182
      // Predicated region
      $region29: #{tpu_custom_call.1} parent=5 // pred_check
        _
      $region30: #{tpu_custom_call.1} parent=5 // pred_check_branch
        %185 = sbr.rel (%p182) target = $region32
      $region31: #{tpu_custom_call.1} parent=5 // pred_region
        %s186 = ssub.s32 %s12, 1
        %s187 = sand.u32 %s86, 1
        %s188 = scalar_lea.sflag [#allocation3], %s187
        %s189 = sand.u32 %s86, 1
        %s190 = smul.addr %s189, 256
        %s191 = scalar_lea.vmem [#allocation2], %s190
        // Predicated region
        $region33: #{tpu_custom_call.1} parent=31 // pred_check
          %p192 = pneg %p99
        $region34: #{tpu_custom_call.1} parent=31 // pred_check_branch
          %194 = sbr.rel (%p192) target = $region36
        $region35: #{tpu_custom_call.1} parent=31 // pred_region
          %196 = dma.done %s188, 4096
        $region36: #{tpu_custom_call.1} parent=31 // pred_fallthru
          _
        %p197 = scmp.lt.s32.totalorder %s21, 1
        %s198 = scalar_select %p197, %s21, 1
        %s199 = smul.addr %s198, 4
        %s200 = scalar_lea.vmem %s0, %s199
        %p201 = pneg %p50
        %p202 = pneg %p47
        %p203 = pneg %p71
        %p204 = pneg %p68
        %s205 = sand.u32 %s86, 1
        %s206 = scalar_lea.sflag [#allocation3], %s205
        %s207 = sand.u32 %s86, 1
        %s208 = smul.addr %s207, 256
        %s209 = scalar_lea.vmem [#allocation2], %s208
        %p210 = pneg %p99
        %p211 = pneg %p96
        %p212 = pneg %p127
        %p213 = pneg %p124
        %s214 = smul.u32 8, %s22
        %p215 = scmp.lt.s32.totalorder %s21, 1
        %s216 = scalar_select %p215, %s21, 1
        %p217 = scmp.lt.s32.totalorder %s214, 7
        %s218 = scalar_select %p217, %s214, 7
        %s219 = smul.addr %s216, 8
        %s220 = sadd.s32 %s218, %s219
        %s221 = smul.addr %s220, 4
        %s222 = scalar_lea.vmem %s3, %s221
        %p223 = scmp.lt.s32.totalorder %s21, 1
        %s224 = scalar_select %p223, %s21, 1
        %s225 = smul.addr %s224, 4
        %s226 = scalar_lea.vmem %s0, %s225
        %s227 = smul.u32 8, %s22
        %s228 = smul.u32 8, %s22
        %p229 = scmp.lt.s32.totalorder %s21, 1
        %s230 = scalar_select %p229, %s21, 1
        %p231 = scmp.lt.s32.totalorder %s228, 7
        %s232 = scalar_select %p231, %s228, 7
        %s233 = smul.addr %s230, 8
        %s234 = sadd.s32 %s232, %s233
        %s235 = smul.addr %s234, 4
        %s236 = scalar_lea.vmem %s3, %s235
        %s237 = smul.u32 8, %s22
        %v238 = vld [vmem:[%s226] sm:$0x7]
        %v239 = vld [vmem:[%s191] sm:$0xff]
        %v240 = vld [vmem:[%s191 + $0x8] sm:$0xff]
        %v241 = vld [vmem:[%s191 + $0x10] sm:$0xff]
        %v242 = vld [vmem:[%s191 + $0x18] sm:$0xff]
        %v243 = vld [vmem:[%s191 + $0x20] sm:$0xff]
        %v244 = vld [vmem:[%s191 + $0x28] sm:$0xff]
        %v245 = vld [vmem:[%s191 + $0x30] sm:$0xff]
        %v246 = vld [vmem:[%s191 + $0x38] sm:$0xff]
        %v247 = vld [vmem:[%s191 + $0x40] sm:$0xff]
        %v248 = vld [vmem:[%s191 + $0x48] sm:$0xff]
        %v249 = vld [vmem:[%s191 + $0x50] sm:$0xff]
        %v250 = vld [vmem:[%s191 + $0x58] sm:$0xff]
        %v251 = vld [vmem:[%s191 + $0x60] sm:$0xff]
        %v252 = vld [vmem:[%s191 + $0x68] sm:$0xff]
        %v253 = vld [vmem:[%s191 + $0x70] sm:$0xff]
        %v254 = vld [vmem:[%s191 + $0x78] sm:$0xff]
        %v255 = vld [vmem:[%s191 + $0x80] sm:$0xff]
        %v256 = vld [vmem:[%s191 + $0x88] sm:$0xff]
        %v257 = vld [vmem:[%s191 + $0x90] sm:$0xff]
        %v258 = vld [vmem:[%s191 + $0x98] sm:$0xff]
        %v259 = vld [vmem:[%s191 + $0xa0] sm:$0xff]
        %v260 = vld [vmem:[%s191 + $0xa8] sm:$0xff]
        %v261 = vld [vmem:[%s191 + $0xb0] sm:$0xff]
        %v262 = vld [vmem:[%s191 + $0xb8] sm:$0xff]
        %v263 = vld [vmem:[%s191 + $0xc0] sm:$0xff]
        %v264 = vld [vmem:[%s191 + $0xc8] sm:$0xff]
        %v265 = vld [vmem:[%s191 + $0xd0] sm:$0xff]
        %v266 = vld [vmem:[%s191 + $0xd8] sm:$0xff]
        %v267 = vld [vmem:[%s191 + $0xe0] sm:$0xff]
        %v268 = vld [vmem:[%s191 + $0xe8] sm:$0xff]
        %v269 = vld [vmem:[%s191 + $0xf0] sm:$0xff]
        %v270 = vld [vmem:[%s191 + $0xf8] sm:$0xff]
        %v271 = vld [vmem:[%s1] sm:$0x7]
        %273 = vset.pattern.permute.xlu0 0
        %274 = vperm.xlu0 %273, %v271
        %v275 = vpop.permute.xlu0 %274
        %vm277 = vcmask 261120
        %v279 = vsel %vm277, %v238, 0
        %281 = vmatpush.msra.mxu0 0.0
        %282 = vmatpush.msra.mxu0 0.0
        %283 = vmatpush.msra.mxu0 0.0
        %284 = vmatpush.msra.mxu0 0.0
        %285 = vmatpush.msra.mxu0 0.0
        %286 = vmatpush.msra.mxu0 0.0
        %287 = vmatpush.msra.mxu0 0.0
        %288 = vmatpush.msra.mxu0 0.0
        %289 = vmatpush.msra.mxu0 0.0
        %290 = vmatpush.msra.mxu0 0.0
        %291 = vmatpush.msra.mxu0 0.0
        %292 = vmatpush.msra.mxu0 0.0
        %293 = vmatpush.msra.mxu0 %v263
        %294 = vmatpush.msra.mxu0 %v255
        %295 = vmatpush.msra.mxu0 %v247
        %296 = vmatpush.msra.mxu0 %v239
        %297 = vmatmul.f32.gmra.mxu0 %v279
        %v298 = vpop.f32.mrf.mxu0
        %v299 = vadd.f32 %v275, %v298
        %300 = vdwg.mxu0
        %301 = vmatpush.msra.mxu0 0.0
        %302 = vmatpush.msra.mxu0 0.0
        %303 = vmatpush.msra.mxu0 0.0
        %304 = vmatpush.msra.mxu0 0.0
        %305 = vmatpush.msra.mxu0 0.0
        %306 = vmatpush.msra.mxu0 0.0
        %307 = vmatpush.msra.mxu0 0.0
        %308 = vmatpush.msra.mxu0 0.0
        %309 = vmatpush.msra.mxu0 0.0
        %310 = vmatpush.msra.mxu0 0.0
        %311 = vmatpush.msra.mxu0 0.0
        %312 = vmatpush.msra.mxu0 0.0
        %313 = vmatpush.msra.mxu0 %v264
        %314 = vmatpush.msra.mxu0 %v256
        %315 = vmatpush.msra.mxu0 %v248
        %316 = vmatpush.msra.mxu0 %v240
        %317 = vmatmul.f32.gmra.mxu0 %v279
        %v318 = vpop.f32.mrf.mxu0
        %v319 = vadd.f32 %v275, %v318
        %320 = vdwg.mxu0
        %321 = vmatpush.msra.mxu0 0.0
        %322 = vmatpush.msra.mxu0 0.0
        %323 = vmatpush.msra.mxu0 0.0
        %324 = vmatpush.msra.mxu0 0.0
        %325 = vmatpush.msra.mxu0 0.0
        %326 = vmatpush.msra.mxu0 0.0
        %327 = vmatpush.msra.mxu0 0.0
        %328 = vmatpush.msra.mxu0 0.0
        %329 = vmatpush.msra.mxu0 0.0
        %330 = vmatpush.msra.mxu0 0.0
        %331 = vmatpush.msra.mxu0 0.0
        %332 = vmatpush.msra.mxu0 0.0
        %333 = vmatpush.msra.mxu0 %v265
        %334 = vmatpush.msra.mxu0 %v257
        %335 = vmatpush.msra.mxu0 %v249
        %336 = vmatpush.msra.mxu0 %v241
        %337 = vmatmul.f32.gmra.mxu0 %v279
        %v338 = vpop.f32.mrf.mxu0
        %v339 = vadd.f32 %v275, %v338
        %340 = vdwg.mxu0
        %341 = vmatpush.msra.mxu0 0.0
        %342 = vmatpush.msra.mxu0 0.0
        %343 = vmatpush.msra.mxu0 0.0
        %344 = vmatpush.msra.mxu0 0.0
        %345 = vmatpush.msra.mxu0 0.0
        %346 = vmatpush.msra.mxu0 0.0
        %347 = vmatpush.msra.mxu0 0.0
        %348 = vmatpush.msra.mxu0 0.0
        %349 = vmatpush.msra.mxu0 0.0
        %350 = vmatpush.msra.mxu0 0.0
        %351 = vmatpush.msra.mxu0 0.0
        %352 = vmatpush.msra.mxu0 0.0
        %353 = vmatpush.msra.mxu0 %v266
        %354 = vmatpush.msra.mxu0 %v258
        %355 = vmatpush.msra.mxu0 %v250
        %356 = vmatpush.msra.mxu0 %v242
        %357 = vmatmul.f32.gmra.mxu0 %v279
        %v358 = vpop.f32.mrf.mxu0
        %v359 = vadd.f32 %v275, %v358
        %360 = vdwg.mxu0
        %361 = vmatpush.msra.mxu0 0.0
        %362 = vmatpush.msra.mxu0 0.0
        %363 = vmatpush.msra.mxu0 0.0
        %364 = vmatpush.msra.mxu0 0.0
        %365 = vmatpush.msra.mxu0 0.0
        %366 = vmatpush.msra.mxu0 0.0
        %367 = vmatpush.msra.mxu0 0.0
        %368 = vmatpush.msra.mxu0 0.0
        %369 = vmatpush.msra.mxu0 0.0
        %370 = vmatpush.msra.mxu0 0.0
        %371 = vmatpush.msra.mxu0 0.0
        %372 = vmatpush.msra.mxu0 0.0
        %373 = vmatpush.msra.mxu0 %v267
        %374 = vmatpush.msra.mxu0 %v259
        %375 = vmatpush.msra.mxu0 %v251
        %376 = vmatpush.msra.mxu0 %v243
        %377 = vmatmul.f32.gmra.mxu0 %v279
        %v378 = vpop.f32.mrf.mxu0
        %v379 = vadd.f32 %v275, %v378
        %380 = vdwg.mxu0
        %381 = vmatpush.msra.mxu0 0.0
        %382 = vmatpush.msra.mxu0 0.0
        %383 = vmatpush.msra.mxu0 0.0
        %384 = vmatpush.msra.mxu0 0.0
        %385 = vmatpush.msra.mxu0 0.0
        %386 = vmatpush.msra.mxu0 0.0
        %387 = vmatpush.msra.mxu0 0.0
        %388 = vmatpush.msra.mxu0 0.0
        %389 = vmatpush.msra.mxu0 0.0
        %390 = vmatpush.msra.mxu0 0.0
        %391 = vmatpush.msra.mxu0 0.0
        %392 = vmatpush.msra.mxu0 0.0
        %393 = vmatpush.msra.mxu0 %v268
        %394 = vmatpush.msra.mxu0 %v260
        %395 = vmatpush.msra.mxu0 %v252
        %396 = vmatpush.msra.mxu0 %v244
        %397 = vmatmul.f32.gmra.mxu0 %v279
        %v398 = vpop.f32.mrf.mxu0
        %v399 = vadd.f32 %v275, %v398
        %400 = vdwg.mxu0
        %401 = vmatpush.msra.mxu0 0.0
        %402 = vmatpush.msra.mxu0 0.0
        %403 = vmatpush.msra.mxu0 0.0
        %404 = vmatpush.msra.mxu0 0.0
        %405 = vmatpush.msra.mxu0 0.0
        %406 = vmatpush.msra.mxu0 0.0
        %407 = vmatpush.msra.mxu0 0.0
        %408 = vmatpush.msra.mxu0 0.0
        %409 = vmatpush.msra.mxu0 0.0
        %410 = vmatpush.msra.mxu0 0.0
        %411 = vmatpush.msra.mxu0 0.0
        %412 = vmatpush.msra.mxu0 0.0
        %413 = vmatpush.msra.mxu0 %v269
        %414 = vmatpush.msra.mxu0 %v261
        %415 = vmatpush.msra.mxu0 %v253
        %416 = vmatpush.msra.mxu0 %v245
        %417 = vmatmul.f32.gmra.mxu0 %v279
        %v418 = vpop.f32.mrf.mxu0
        %v419 = vadd.f32 %v275, %v418
        %420 = vdwg.mxu0
        %421 = vmatpush.msra.mxu0 0.0
        %422 = vmatpush.msra.mxu0 0.0
        %423 = vmatpush.msra.mxu0 0.0
        %424 = vmatpush.msra.mxu0 0.0
        %425 = vmatpush.msra.mxu0 0.0
        %426 = vmatpush.msra.mxu0 0.0
        %427 = vmatpush.msra.mxu0 0.0
        %428 = vmatpush.msra.mxu0 0.0
        %429 = vmatpush.msra.mxu0 0.0
        %430 = vmatpush.msra.mxu0 0.0
        %431 = vmatpush.msra.mxu0 0.0
        %432 = vmatpush.msra.mxu0 0.0
        %433 = vmatpush.msra.mxu0 %v270
        %434 = vmatpush.msra.mxu0 %v262
        %435 = vmatpush.msra.mxu0 %v254
        %436 = vmatpush.msra.mxu0 %v246
        %437 = vmatmul.f32.gmra.mxu0 %v279
        %v438 = vpop.f32.mrf.mxu0
        %v439 = vadd.f32 %v275, %v438
        %440 = vdwg.mxu0
        %v441 = vmax.f32 %v299, -256.0
        %v442 = vmax.f32 %v319, -256.0
        %v443 = vmax.f32 %v339, -256.0
        %v444 = vmax.f32 %v359, -256.0
        %v445 = vmax.f32 %v379, -256.0
        %v446 = vmax.f32 %v399, -256.0
        %v447 = vmax.f32 %v419, -256.0
        %v448 = vmax.f32 %v439, -256.0
        %v449 = vmin.f32 %v441, 256.0
        %v450 = vmin.f32 %v442, 256.0
        %v451 = vmin.f32 %v443, 256.0
        %v452 = vmin.f32 %v444, 256.0
        %v453 = vmin.f32 %v445, 256.0
        %v454 = vmin.f32 %v446, 256.0
        %v455 = vmin.f32 %v447, 256.0
        %v456 = vmin.f32 %v448, 256.0
        %v465 = vrot.slane %v450, 4
        %v466 = vrot.slane %v452, 4
        %v467 = vrot.slane %v454, 4
        %v468 = vrot.slane %v456, 4
        %vm469 = vcmask 1043456
        %v470 = vsel %vm469, %v449, %v465
        %v471 = vsel %vm469, %v451, %v466
        %v472 = vsel %vm469, %v453, %v467
        %v473 = vsel %vm469, %v455, %v468
        %478 = vst [vmem:[%s236] sm:$0x77] %v470
        %479 = vst [vmem:[%s236 + $0x8] sm:$0x77] %v471
        %480 = vst [vmem:[%s236 + $0x10] sm:$0x77] %v472
        %481 = vst [vmem:[%s236 + $0x18] sm:$0x77] %v473
        %s482 = smul.u32 8, %s22
        %p483 = scmp.lt.s32.totalorder %s21, 1
        %s484 = scalar_select %p483, %s21, 1
        %p485 = scmp.lt.s32.totalorder %s482, 7
        %s486 = scalar_select %p485, %s482, 7
        %s487 = smul.addr %s484, 8
        %s488 = sadd.s32 %s486, %s487
        %s489 = smul.addr %s488, 4
        %s490 = scalar_lea.vmem %s3, %s489
        // Predicated region
        $region37: #{tpu_custom_call.1} parent=31 // pred_check
          %p491 = pneg %p124
        $region38: #{tpu_custom_call.1} parent=31 // pred_check_branch
          %493 = sbr.rel (%p491) target = $region40
        $region39: #{tpu_custom_call.1} parent=31 // pred_region
          %s494 = smul.u32 8, %s22
        $region40: #{tpu_custom_call.1} parent=31 // pred_fallthru
          _
      $region32: #{tpu_custom_call.1} parent=5 // pred_fallthru
        _
      %p495 = scmp.le.s32.totalorder 2, %s12
      // Predicated region
      $region41: #{tpu_custom_call.1} parent=5 // pred_check
        %p496 = pneg %p495
      $region42: #{tpu_custom_call.1} parent=5 // pred_check_branch
        %498 = sbr.rel (%p496) target = $region44
      $region43: #{tpu_custom_call.1} parent=5 // pred_region
        %s499 = ssub.s32 %s12, 2
        // Predicated region
        $region45: #{tpu_custom_call.1} parent=43 // pred_check
          %p500 = pneg %p130
        $region46: #{tpu_custom_call.1} parent=43 // pred_check_branch
          %502 = sbr.rel (%p500) target = $region48
        $region47: #{tpu_custom_call.1} parent=43 // pred_region
          %s503 = smul.u32 8, %s24
          %p504 = scmp.lt.s32.totalorder %s23, 1
          %s505 = scalar_select %p504, %s23, 1
          %p506 = scmp.lt.s32.totalorder %s503, 7
          %s507 = scalar_select %p506, %s503, 7
          %s508 = smul.addr %s505, 8
          %s509 = sadd.s32 %s507, %s508
          %s510 = smul.addr %s509, 4
          %s511 = scalar_lea.vmem %s3, %s510
        $region48: #{tpu_custom_call.1} parent=43 // pred_fallthru
          _
      $region44: #{tpu_custom_call.1} parent=5 // pred_fallthru
        _
    $region6: #{tpu_custom_call.1} parent=1 // loop_footer
      %s16 = sadd.s32 1, %s12
    $region7: #{tpu_custom_call.1} parent=1 // loop_footer_branch
      %11 = sbr.rel target = $region3
    $region8: #{tpu_custom_call.1} parent=1 // loop_exit
      _
    %512 = vsyncpa [#allocation3], 1
    %s513 = scalar_lea.sflag [#allocation3], 1
    %514 = vsyncpa %s513, 1

</llo_original>
